<compile_context>
chip_gen: v5e
topology: v5e:2x2
jax: 0.10.0
libtpu: 0.0.40
codegen_flags: <defaults>
</compile_context>

<pallas_src>
import math

import jax
import jax.numpy as jnp
from jax.experimental import pallas as pl
from jax.experimental.pallas import tpu as pltpu


_SUBLANE = 8
_LANE_OPTIONS = (8192, 4096, 2048, 1024, 512, 256, 128)
_MIN_PALLAS_BYTES = 256 << 10  # below this, a plain XLA copy is cheaper


def _copy_kernel(x_ref, o_ref):
    # Identity copy of the current lane-dense tile.
    o_ref[...] = x_ref[...]


def _block_budget():
    """Per-generation (max block bytes, scoped-VMEM limit)."""
    try:
        cap = int(pltpu.get_tpu_info().vmem_capacity_bytes)
    except Exception:
        cap = 64 << 20  # conservative: assume v7x (64 MiB per TensorCore)
    if cap >= (96 << 20):          # v5e / v6e: 128 MiB VMEM
        return 8 << 20, 48 << 20   # 8 MiB blocks, in+out double-buffered ~32 MiB
    return 4 << 20, 32 << 20       # v7x: 64 MiB per TC -> 4 MiB blocks


def _divisors(n):
    ds = set()
    i = 1
    while i * i <= n:
        if n % i == 0:
            ds.add(i)
            ds.add(n // i)
        i += 1
    return ds


def _choose_tiling(total, itemsize, max_block_bytes):
    """Pick (lane_cols, block_rows, rows) for a lane-dense 2-D copy.

    Preference order:
      1. block fits the per-block VMEM budget,
      2. grid has an even number of steps, >= 4 (>= 2 per v7x TensorCore),
      3. block_rows is a multiple of 8 (full-sublane, unmasked vst),
      4. largest block (amortize ~0.35 us per-grid-step overhead),
      5. widest lane dimension.
    All candidate block heights divide `rows` exactly -> no masked edge block.
    Returns None iff `total` is not a multiple of 128.
    """
    best, best_key = None, None
    for lane_cols in _LANE_OPTIONS:
        if total % lane_cols:
            continue
        rows = total // lane_cols
        row_bytes = lane_cols * itemsize
        cands = {rows}  # block == full dim is exempt from the (8,128) rule
        if rows % _SUBLANE == 0:
            cands.update(d for d in _divisors(rows) if d % _SUBLANE == 0)
        for br in cands:
            nblk = rows // br
            bb = br * row_bytes
            fits = bb <= max_block_bytes
            key = (
                fits,
                nblk >= 4 and nblk % 2 == 0,   # even split, >=2 steps per core
                br % _SUBLANE == 0,            # unmasked full-sublane stores
                bb if fits else -bb,           # big (fits) / closest-to-budget
                lane_cols,
            )
            if best_key is None or key > best_key:
                best_key, best = key, (lane_cols, br, rows)

    if best is None:
        return None
    if not best_key[0]:
        # Pathological row counts: no evenly-dividing block fits the budget.
        # Use a budget-sized block; Pallas masks the single ragged edge block
        # (slow edge, but correct and VMEM-bounded on every generation).
        lane_cols = 128
        rows = total // lane_cols
        block_rows = max(_SUBLANE,
                         (max_block_bytes // (lane_cols * itemsize))
                         // _SUBLANE * _SUBLANE)
        return lane_cols, min(block_rows, rows), rows
    return best


def _tiled_copy(flat, lane_cols, block_rows, rows, itemsize,
                max_block_bytes, vmem_budget):
    """Pallas identity copy of a lane-aligned 1-D array via a 2-D tiled grid."""
    total = rows * lane_cols
    dtype = flat.dtype
    block_bytes = block_rows * lane_cols * itemsize
    num_blocks = pl.cdiv(rows, block_rows)
    # in + out, double-buffered (~4x block) plus headroom; explicit so v5e's
    # 16 MiB scoped default never bites, capped per generation.
    vmem_limit = int(max(16 << 20, min(vmem_budget, 4 * block_bytes + (4 << 20))))

    out2d = pl.pallas_call(
        _copy_kernel,
        out_shape=jax.ShapeDtypeStruct((rows, lane_cols), dtype),
        grid=(num_blocks,),
        in_specs=[pl.BlockSpec((block_rows, lane_cols), lambda i: (i, 0))],
        out_specs=pl.BlockSpec((block_rows, lane_cols), lambda i: (i, 0)),
        compiler_params=pltpu.CompilerParams(
            dimension_semantics=("parallel",),   # shard the copy across TCs
            vmem_limit_bytes=vmem_limit,
        ),
        cost_estimate=pl.CostEstimate(
            flops=0, transcendentals=0, bytes_accessed=2 * total * itemsize),
    )(flat.reshape(rows, lane_cols))
    return out2d.reshape(total)


def _full_block_copy(flat_small, itemsize):
    """Single full-array-block copy (only used for tiny, <~1 KiB-ish arrays)."""
    n = flat_small.shape[0]
    dtype = flat_small.dtype
    out = pl.pallas_call(
        _copy_kernel,
        out_shape=jax.ShapeDtypeStruct((1, n), dtype),
        grid=(1,),
        in_specs=[pl.BlockSpec((1, n), lambda i: (0, 0))],
        out_specs=pl.BlockSpec((1, n), lambda i: (0, 0)),
        compiler_params=pltpu.CompilerParams(
            dimension_semantics=("arbitrary",),
            vmem_limit_bytes=16 << 20,
        ),
        cost_estimate=pl.CostEstimate(
            flops=0, transcendentals=0, bytes_accessed=2 * n * itemsize),
    )(flat_small.reshape(1, n))
    return out.reshape(n)


def _materialized_copy(flat):
    """Fresh materialized copy of a 1-D array, through Pallas."""
    total = flat.shape[0]
    itemsize = jnp.dtype(flat.dtype).itemsize
    max_block_bytes, vmem_budget = _block_budget()

    tiling = _choose_tiling(total, itemsize, max_block_bytes)
    if tiling is not None:
        lane_cols, block_rows, rows = tiling
        return _tiled_copy(flat, lane_cols, block_rows, rows, itemsize,
                           max_block_bytes, vmem_budget)

    # total is not a multiple of 128.
    main = (total // 128) * 128
    if main >= 1024:
        # Lane-dense tiled copy for the main slab + tiny tail copy; keeps VMEM
        # bounded (never a (1, total) block) on v7x's 64 MiB as well.
        lane_cols, block_rows, rows = _choose_tiling(main, itemsize,
                                                     max_block_bytes)
        main_out = _tiled_copy(flat[:main], lane_cols, block_rows, rows,
                               itemsize, max_block_bytes, vmem_budget)
        tail_out = _full_block_copy(flat[main:], itemsize)
        # TODO(synk): fuse the tail into the tiled call to avoid the extra
        # concatenate pass (rare path: misaligned element count + materialize).
        return jnp.concatenate([main_out, tail_out])

    # Tiny misaligned tensor: single full-array block (exempt from (8,128)).
    return _full_block_copy(flat, itemsize)


def view_pallas(x, out_shape, *, materialize=False, donate_input=False,
                min_pallas_bytes=_MIN_PALLAS_BYTES):
    """Equivalent of View(out_shape).forward(x).

    Default (materialize=False): metadata-only reshape — exactly torch.view.
    materialize=True: route the bytes through a tiled Pallas identity copy.
    donate_input=True: the copy would read and rewrite identical bytes into
    the same (donated) buffer — pure wasted HBM traffic — so it is skipped.
    """
    batch = x.shape[0]
    out_shape = tuple(int(s) for s in out_shape)
    feat = math.prod(x.shape[1:])
    assert feat == math.prod(out_shape), (
        f"cannot view {x.shape} as {(batch,) + out_shape}")
    final_shape = (batch,) + out_shape

    if not materialize or donate_input:
        # torch.view semantics: pure metadata, row-major order preserved.
        return jnp.reshape(x, final_shape)

    total = batch * feat
    itemsize = jnp.dtype(x.dtype).itemsize
    if total * itemsize < min_pallas_bytes:
        # Tiny tensors: fixed pallas_call/grid overhead dominates the copy.
        return jnp.copy(jnp.reshape(x, final_shape))

    flat = jnp.reshape(x, (total,))
    return _materialized_copy(flat).reshape(final_shape)


if __name__ == "__main__":
    key = jax.random.PRNGKey(0)
    k1, k2, k3, k4 = jax.random.split(key, 4)

    # Case 1: flat nn.Linear activations (2, 1024) viewed to (2, 4, 16, 16).
    batch, out_shape = 2, (4, 16, 16)
    feat = math.prod(out_shape)
    x = jax.random.normal(k1, (batch, feat), dtype=jnp.float32)
    ref = x.reshape((batch,) + out_shape)
    y_fast = view_pallas(x, out_shape)                          # metadata only
    y_copy = view_pallas(x, out_shape, materialize=True,
                         min_pallas_bytes=0)                    # force Pallas copy
    y_fast, y_copy = jax.block_until_ready((y_fast, y_copy))
    assert y_fast.shape == ref.shape and y_copy.shape == ref.shape
    assert y_fast.dtype == x.dtype and y_copy.dtype == x.dtype
    assert bool(jnp.array_equal(y_fast, ref))
    assert bool(jnp.array_equal(y_copy, ref))

    # Case 2: 1 MiB slab -> tiled path, 4 even "parallel" grid steps.
    batch2, out_shape2 = 16, (128, 128)
    x2 = jax.random.normal(k2, (batch2, math.prod(out_shape2)), dtype=jnp.float32)
    y2 = jax.block_until_ready(view_pallas(x2, out_shape2, materialize=True))
    assert bool(jnp.array_equal(y2, x2.reshape((batch2,) + out_shape2)))

    # Case 3: tiny misaligned feature count -> single full-block fallback.
    x3 = jax.random.normal(k3, (2, 15), dtype=jnp.float32)
    y3 = jax.block_until_ready(
        view_pallas(x3, (3, 5), materialize=True, min_pallas_bytes=0))
    assert bool(jnp.array_equal(y3, x3.reshape(2, 3, 5)))

    # Case 4: larger misaligned count -> lane-dense main slab + tiny tail.
    x4 = jax.random.normal(k4, (2, 2055), dtype=jnp.float32)
    y4 = jax.block_until_ready(
        view_pallas(x4, (3, 685), materialize=True, min_pallas_bytes=0))
    assert bool(jnp.array_equal(y4, x4.reshape(2, 3, 685)))

    # Case 5: donated input -> the copy is skipped entirely (metadata only).
    y5 = jax.block_until_ready(
        view_pallas(x2, out_shape2, materialize=True, donate_input=True))
    assert bool(jnp.array_equal(y5, x2.reshape((batch2,) + out_shape2)))

    print("KERNEL_OK")
</pallas_src>

<mosaic_0001>
module attributes {stable_mosaic.version = 11 : i64} {
  func.func @_copy_kernel(%arg0: i32, %arg1: memref<8x256xf32, #tpu.memory_space<vmem>>, %arg2: memref<8x256xf32, #tpu.memory_space<vmem>>) attributes {dimension_semantics = [#tpu.dimension_semantics<parallel>], iteration_bounds = array<i64: 1>, scalar_prefetch = 0 : i64, scratch_operands = 0 : i64, tpu.core_type = #tpu.core_type<tc>, window_params = [{transform_indices = @transform_0, window_bounds = array<i64: 8, 256>}, {transform_indices = @transform_1, window_bounds = array<i64: 8, 256>}]} {
    %c0 = arith.constant 0 : index
    %c0_0 = arith.constant 0 : index
    %0 = vector.load %arg1[%c0, %c0_0] : memref<8x256xf32, #tpu.memory_space<vmem>>, vector<8x256xf32>
    %c0_1 = arith.constant 0 : index
    %c0_2 = arith.constant 0 : index
    %1 = vector.load %arg2[%c0_1, %c0_2] : memref<8x256xf32, #tpu.memory_space<vmem>>, vector<8x256xf32>
    tpu.vector_store %arg2[%c0_1, %c0_2], %0 {strides = array<i32>} : memref<8x256xf32, #tpu.memory_space<vmem>>, vector<8x256xf32>,
    return
  }
  func.func @transform_0(%arg0: i32) -> (i32, i32) {
    %c0_i32 = arith.constant 0 : i32
    %c0_i32_0 = arith.constant 0 : i32
    return %arg0, %c0_i32 : i32, i32
  }
  func.func @transform_1(%arg0: i32) -> (i32, i32) {
    %c0_i32 = arith.constant 0 : i32
    %c0_i32_0 = arith.constant 0 : i32
    return %arg0, %c0_i32 : i32, i32
  }
}

</mosaic_0001>

<llo_original>
// kernel: tpu_custom_call.1
$region0: #{tpu_custom_call.1}
  #allocation0 [shape = 'u32[]', space=smem, size = 0x4, offset = 0x4, fixed_abs, tag = 'smem constant byte address 0x4 - core index']
  #allocation1 [shape = 'u32[72,128]{1,0:T(1,128)}', space=vmem, size = 0x9000, scoped, tag = 'internal scratch']
  %s0 = inlined_call_operand.hbm [shape: f32[8,256], index: 0, kind: input, shape index: {}]
  %s1 = inlined_call_operand.hbm [shape: f32[8,256], index: 1, kind: output, shape index: {}]
  %s2 = sld [smem:[#allocation0]]
  $region18: #{tpu_custom_call.1} parent=0
    _
  %s4 = ssub.s32 1, %s2
  %s5 = scalar_select 0, %s4, %s2
  $region1: #{tpu_custom_call.1} parent=0
    #allocation2 [shape = 'u8[8192]{0}', space=vmem, size = 0x2000, scoped, tag = 'input window, operand 0, single buffered']
    #allocation3 [shape = 's32[1]{0}', space=sflag, size = 0x4, scoped, tag = 'scoped memory for tpu_custom_call.1']
    #allocation4 [shape = 's32[1]{0}', space=sflag, size = 0x4, scoped, tag = 'scoped memory for tpu_custom_call.1']
    #allocation5 [shape = 'u8[8192]{0}', space=vmem, size = 0x2000, scoped, tag = 'output window, operand 0, single buffered']
    %6 = vsyncpa [#allocation3], 0
    %7 = vsyncpa [#allocation4], 0
    // Predicated region
    $region2: #{tpu_custom_call.1} parent=1 // pred_check
      _
    $region3: #{tpu_custom_call.1} parent=1 // pred_check_branch
      %9 = sbr.rel (0) target = $region5
    $region4: #{tpu_custom_call.1} parent=1 // pred_region
      %11 = vsyncadd [#allocation3], 0
      %s13 = sshll.u32 %s0, 4
      %s14 = int_to_ptr.hbm [resolvable:$true] %s13
      %s15 = sshll.u32 [#allocation2], 4
      %s16 = int_to_ptr.vmem [resolvable:$true] %s15
      %18 = dma.hbm_to_vmem [thread:$0]  %s14, 256, %s16, [#allocation3]
    $region5: #{tpu_custom_call.1} parent=1 // pred_fallthru
      _
    // Predicated region
    $region6: #{tpu_custom_call.1} parent=1 // pred_check
      _
    $region7: #{tpu_custom_call.1} parent=1 // pred_check_branch
      %20 = sbr.rel (0) target = $region9
    $region8: #{tpu_custom_call.1} parent=1 // pred_region
      %22 = dma.done [#allocation3], 256
    $region9: #{tpu_custom_call.1} parent=1 // pred_fallthru
      _
    %v23 = vld [vmem:[#allocation2] sm:$0xff]
    %v24 = vld [vmem:[#allocation2 + $0x8] sm:$0xff]
    %25 = vst [vmem:[#allocation5] sm:$0xff] %v23
    %26 = vst [vmem:[#allocation5 + $0x8] sm:$0xff] %v24
    // Predicated region
    $region10: #{tpu_custom_call.1} parent=1 // pred_check
      _
    $region11: #{tpu_custom_call.1} parent=1 // pred_check_branch
      %28 = sbr.rel (0) target = $region13
    $region12: #{tpu_custom_call.1} parent=1 // pred_region
      %30 = vsyncadd [#allocation4], 0
      %s32 = sshll.u32 [#allocation5], 4
      %s33 = int_to_ptr.vmem [resolvable:$true] %s32
      %s34 = sshll.u32 %s1, 4
      %s35 = int_to_ptr.hbm [resolvable:$true] %s34
      %37 = dma.vmem_to_hbm [thread:$0]  %s33, 256, %s35, [#allocation4]
    $region13: #{tpu_custom_call.1} parent=1 // pred_fallthru
      _
    // Predicated region
    $region14: #{tpu_custom_call.1} parent=1 // pred_check
      _
    $region15: #{tpu_custom_call.1} parent=1 // pred_check_branch
      %39 = sbr.rel (0) target = $region17
    $region16: #{tpu_custom_call.1} parent=1 // pred_region
      %41 = dma.done [#allocation4], 256
    $region17: #{tpu_custom_call.1} parent=1 // pred_fallthru
      _
    %42 = vsyncpa [#allocation3], 1
    %43 = vsyncpa [#allocation4], 1

</llo_original>
